<compile_context>
chip_gen: v7x
topology: tpu7x:2x2x1
jax: 0.10.0
libtpu: 0.0.40
codegen_flags: <defaults>
</compile_context>

<pallas_src>
import functools

import jax
import jax.numpy as jnp
from jax.experimental import pallas as pl
from jax.experimental.pallas import tpu as pltpu


def _opm_kernel(a_ref, p_ref, mi_ref, mj_ref, bias_ref, o_ref, *, eps):
    """One (batch, i-tile) slab of the outer-product-mean.

    a_ref   : (1, TILE_I, H)       i-rows of `a`
    p_ref   : (1, H, N*C_z)        b-rows pre-contracted with linear_out weight
    mi_ref  : (1, TILE_I, 1)       mask of the i rows
    mj_ref  : (1, 1, N*C_z)        mask of the j rows, repeated C_z times (lane-flat)
    bias_ref: (1, N*C_z)           linear_out bias tiled N times (lane-flat)
    o_ref   : (1, TILE_I, N*C_z)   flattened (j, z) output slab
    """
    a_t = a_ref[0]                                                # [TILE_I, H]
    p_b = p_ref[0]                                                # [H, N*C_z]
    # Single MXU matmul covering the whole i-tile and the whole (j, z) plane.
    out = jnp.dot(a_t, p_b, preferred_element_type=jnp.float32)   # [TILE_I, N*C_z]
    out = out + bias_ref[...].astype(jnp.float32)                 # broadcast rows
    # One reciprocal on the broadcast norm (EUP) + a multiply; no per-z divides.
    norm = mi_ref[0].astype(jnp.float32) * mj_ref[0].astype(jnp.float32)
    inv = pl.reciprocal(eps + norm, approx=True)                  # [TILE_I, N*C_z]
    o_ref[0] = (out * inv).astype(o_ref.dtype)


def _auto_tile_i(N, c_z, out_itemsize, vmem_cap):
    # Double-buffered output slab is the big VMEM consumer; budget ~1/3 of VMEM.
    out_budget = max(4 << 20, vmem_cap // 3)
    t = out_budget // max(1, 2 * N * c_z * out_itemsize)
    t = int(max(1, min(t, 128, N)))
    while N % t:
        t -= 1
    return t


def outer_product_mean(m, mask, params, *, eps=1e-3, tile_i=None,
                       compute_dtype=None):
    """Pallas-backed forward of OuterProductMean.

    m: [B, N_res, C_m], mask: [B, N_res]  ->  [B, N_res, N_res, C_z]
    """
    ln_w, ln_b, w1, b1, w2, b2, w_out, b_out = params
    B, N, _ = m.shape
    H = w1.shape[0]
    C_z = w_out.shape[0]
    if compute_dtype is None:
        compute_dtype = m.dtype
    out_dtype = m.dtype

    # ---- O(N) glue: LayerNorm + linear_1 / linear_2 + masking ----
    mu = jnp.mean(m, axis=-1, keepdims=True)
    var = jnp.var(m, axis=-1, keepdims=True)
    m_n = (m - mu) * jax.lax.rsqrt(var + 1e-5) * ln_w + ln_b
    mask_f = mask.astype(jnp.float32)
    a = (m_n @ w1.T + b1) * mask_f[..., None]                     # [B, N, H]
    b = (m_n @ w2.T + b2) * mask_f[..., None]                     # [B, N, H]

    # Fold linear_out into b once per batch:
    #   W[c, e, z] = w_out[z, c*H + e]  (matches the torch c*H+e flatten order)
    #   p[b, c, j, z] = sum_e b[b, j, e] * W[c, e, z]
    #   out[b, i, j, z] = sum_c a[b, i, c] * p[b, c, j, z] + b_out[z]
    # identical to (a ⊗ b).reshape(..., H*H) @ w_out.T up to fp reassociation.
    w_res = w_out.T.reshape(H, H, C_z)                            # [c, e, z]
    p = jnp.einsum('bje,cez->bcjz', b, w_res,
                   preferred_element_type=jnp.float32)            # [B, H, N, C_z]
    p_flat = p.reshape(B, H, N * C_z)

    bias_flat = jnp.tile(b_out.astype(jnp.float32), N)[None, :]   # [1, N*C_z]
    mask_i = mask_f[..., None]                                    # [B, N, 1]
    mask_j = jnp.repeat(mask_f, C_z, axis=-1)[:, None, :]         # [B, 1, N*C_z]

    a_in = a.astype(compute_dtype)
    p_in = p_flat.astype(compute_dtype)

    in_itemsize = jnp.dtype(compute_dtype).itemsize
    out_itemsize = jnp.dtype(out_dtype).itemsize
    try:
        vmem_cap = int(pltpu.get_tpu_info().vmem_capacity_bytes)
    except Exception:
        vmem_cap = 64 << 20                                       # v7x-safe fallback
    if tile_i is None:
        tile_i = _auto_tile_i(N, C_z, out_itemsize, vmem_cap)
    assert N % tile_i == 0, (N, tile_i)

    # Explicit VMEM budget (double-buffered operands/output + lane padding).
    need = (2 * H * N * C_z * in_itemsize                         # p
            + 2 * tile_i * max(H, 128) * in_itemsize              # a (lane padded)
            + 2 * tile_i * 128 * 4                                # mask_i (lane padded)
            + 4 * N * C_z * 4                                     # mask_j + bias
            + 2 * tile_i * N * C_z * out_itemsize)                # output slab
    vmem_limit = int(min(vmem_cap * 3 // 4, max(need * 3 // 2, 32 << 20)))

    kernel = functools.partial(_opm_kernel, eps=float(eps))
    out_flat = pl.pallas_call(
        kernel,
        out_shape=jax.ShapeDtypeStruct((B, N, N * C_z), out_dtype),
        grid=(B, N // tile_i),
        in_specs=[
            pl.BlockSpec((1, tile_i, H), lambda bb, ii: (bb, ii, 0)),       # a
            pl.BlockSpec((1, H, N * C_z), lambda bb, ii: (bb, 0, 0)),       # p (resident per batch)
            pl.BlockSpec((1, tile_i, 1), lambda bb, ii: (bb, ii, 0)),       # mask_i
            pl.BlockSpec((1, 1, N * C_z), lambda bb, ii: (bb, 0, 0)),       # mask_j (lane-flat)
            pl.BlockSpec((1, N * C_z), lambda bb, ii: (0, 0)),              # bias (lane-flat)
        ],
        out_specs=pl.BlockSpec((1, tile_i, N * C_z),
                               lambda bb, ii: (bb, ii, 0)),
        compiler_params=pltpu.CompilerParams(
            dimension_semantics=("parallel", "parallel"),
            vmem_limit_bytes=vmem_limit),
    )(a_in, p_in, mask_i, mask_j, bias_flat)

    # Metadata-only reshape back to [B, N, N, C_z].
    return out_flat.reshape(B, N, N, C_z)


def reference(m, mask, params, eps=1e-3):
    """Pure-JAX reference reproducing the PyTorch forward exactly."""
    ln_w, ln_b, w1, b1, w2, b2, w_out, b_out = params
    mu = jnp.mean(m, axis=-1, keepdims=True)
    var = jnp.var(m, axis=-1, keepdims=True)
    m_n = (m - mu) * jax.lax.rsqrt(var + 1e-5) * ln_w + ln_b
    mask_f = mask.astype(m.dtype)
    a = (m_n @ w1.T + b1) * mask_f[..., None]
    b = (m_n @ w2.T + b2) * mask_f[..., None]
    B, N, H = a.shape
    outer = jnp.einsum('bic,bje->bijce', a, b).reshape(B, N, N, H * H)
    outer = outer @ w_out.T + b_out
    norm = mask_f[:, :, None] * mask_f[:, None, :]
    return outer / (eps + norm[..., None])


if __name__ == "__main__":
    B, N, C_m, C_h, C_z = 2, 16, 32, 8, 16
    key = jax.random.PRNGKey(0)
    keys = jax.random.split(key, 10)

    m = jax.random.normal(keys[0], (B, N, C_m), jnp.float32)
    mask = (jax.random.uniform(keys[1], (B, N)) > 0.2).astype(jnp.float32)

    ln_w = 1.0 + 0.1 * jax.random.normal(keys[2], (C_m,), jnp.float32)
    ln_b = 0.1 * jax.random.normal(keys[3], (C_m,), jnp.float32)
    w1 = 0.1 * jax.random.normal(keys[4], (C_h, C_m), jnp.float32)
    b1 = 0.1 * jax.random.normal(keys[5], (C_h,), jnp.float32)
    w2 = 0.1 * jax.random.normal(keys[6], (C_h, C_m), jnp.float32)
    b2 = 0.1 * jax.random.normal(keys[7], (C_h,), jnp.float32)
    # linear_out uses init='final' (zeros) in OpenFold; use small deterministic
    # random values so the numerical check is non-trivial.
    w_out = 0.1 * jax.random.normal(keys[8], (C_z, C_h * C_h), jnp.float32)
    b_out = 0.1 * jax.random.normal(keys[9], (C_z,), jnp.float32)
    params = (ln_w, ln_b, w1, b1, w2, b2, w_out, b_out)

    ref = reference(m, mask, params, eps=1e-3)

    # f32 path. Tolerance accounts for the approx (EUP) reciprocal and the
    # W-folding fp reassociation; any structural/indexing bug would be O(1) off.
    out = outer_product_mean(m, mask, params, eps=1e-3)
    out = jax.block_until_ready(out)
    assert out.shape == (B, N, N, C_z), out.shape
    if not jnp.allclose(out, ref, rtol=1e-2, atol=1e-3):
        raise AssertionError(
            f"f32 mismatch, max abs err = {jnp.max(jnp.abs(out - ref))}")

    # bf16 operand path (f32 MXU accumulate), the recommended production config.
    out_bf = outer_product_mean(m, mask, params, eps=1e-3,
                                compute_dtype=jnp.bfloat16)
    out_bf = jax.block_until_ready(out_bf)
    if not jnp.allclose(out_bf, ref, rtol=5e-2, atol=5e-2):
        raise AssertionError(
            f"bf16 mismatch, max abs err = {jnp.max(jnp.abs(out_bf - ref))}")

    print("KERNEL_OK")
</pallas_src>

<mosaic_0001>
module attributes {stable_mosaic.version = 11 : i64} {
  func.func @_opm_kernel(%arg0: i32, %arg1: i32, %arg2: memref<1x16x8xf32, #tpu.memory_space<vmem>>, %arg3: memref<1x8x256xf32, #tpu.memory_space<vmem>>, %arg4: memref<1x16x1xf32, #tpu.memory_space<vmem>>, %arg5: memref<1x1x256xf32, #tpu.memory_space<vmem>>, %arg6: memref<1x256xf32, #tpu.memory_space<vmem>>, %arg7: memref<1x16x256xf32, #tpu.memory_space<vmem>>) attributes {dimension_semantics = [#tpu.dimension_semantics<parallel>, #tpu.dimension_semantics<parallel>], iteration_bounds = array<i64: 2, 1>, scalar_prefetch = 0 : i64, scratch_operands = 0 : i64, tpu.core_type = #tpu.core_type<tc>, window_params = [{transform_indices = @transform_0, window_bounds = array<i64: 1, 16, 8>}, {transform_indices = @transform_1, window_bounds = array<i64: 1, 8, 256>}, {transform_indices = @transform_2, window_bounds = array<i64: 1, 16, 1>}, {transform_indices = @transform_3, window_bounds = array<i64: 1, 1, 256>}, {pipeline_mode = #tpu.pipeline_mode<synchronous>, transform_indices = @transform_4, window_bounds = array<i64: 1, 256>}, {transform_indices = @transform_5, window_bounds = array<i64: 1, 16, 256>}]} {
    %c0 = arith.constant 0 : index
    %c0_0 = arith.constant 0 : index
    %c0_1 = arith.constant 0 : index
    %0 = vector.load %arg2[%c0, %c0_0, %c0_1] : memref<1x16x8xf32, #tpu.memory_space<vmem>>, vector<1x16x8xf32>
    %1 = vector.shape_cast %0 : vector<1x16x8xf32> to vector<16x8xf32>
    %c0_2 = arith.constant 0 : index
    %c0_3 = arith.constant 0 : index
    %c0_4 = arith.constant 0 : index
    %2 = vector.load %arg3[%c0_2, %c0_3, %c0_4] : memref<1x8x256xf32, #tpu.memory_space<vmem>>, vector<1x8x256xf32>
    %3 = vector.shape_cast %2 : vector<1x8x256xf32> to vector<8x256xf32>
    %cst = arith.constant dense<0.000000e+00> : vector<16x256xf32>
    %4 = tpu.matmul %1, %3, %cst {dimension_numbers = #tpu.dot_dimension_numbers<[1], [0], [0], [1], [0, 0, 1, 1], [], []>} : vector<16x8xf32>, vector<8x256xf32>, vector<16x256xf32> -> vector<16x256xf32>
    %c0_5 = arith.constant 0 : index
    %c0_6 = arith.constant 0 : index
    %5 = vector.load %arg6[%c0_5, %c0_6] : memref<1x256xf32, #tpu.memory_space<vmem>>, vector<1x256xf32>
    %6 = vector.broadcast %5 : vector<1x256xf32> to vector<16x256xf32>
    %7 = arith.addf %4, %6 : vector<16x256xf32>
    %c0_7 = arith.constant 0 : index
    %c0_8 = arith.constant 0 : index
    %c0_9 = arith.constant 0 : index
    %8 = vector.load %arg4[%c0_7, %c0_8, %c0_9] : memref<1x16x1xf32, #tpu.memory_space<vmem>>, vector<1x16x1xf32>
    %9 = vector.shape_cast %8 : vector<1x16x1xf32> to vector<16x1xf32>
    %c0_10 = arith.constant 0 : index
    %c0_11 = arith.constant 0 : index
    %c0_12 = arith.constant 0 : index
    %10 = vector.load %arg5[%c0_10, %c0_11, %c0_12] : memref<1x1x256xf32, #tpu.memory_space<vmem>>, vector<1x1x256xf32>
    %11 = vector.shape_cast %10 : vector<1x1x256xf32> to vector<1x256xf32>
    %12 = vector.broadcast %9 : vector<16x1xf32> to vector<16x256xf32>
    %13 = vector.broadcast %11 : vector<1x256xf32> to vector<16x256xf32>
    %14 = arith.mulf %12, %13 : vector<16x256xf32>
    %cst_13 = arith.constant 1.000000e-03 : f32
    %15 = vector.broadcast %cst_13 : f32 to vector<16x256xf32>
    %16 = arith.addf %15, %14 : vector<16x256xf32>
    %17 = tpu.reciprocal %16 {approx = true} : vector<16x256xf32> -> vector<16x256xf32>
    %18 = arith.mulf %7, %17 : vector<16x256xf32>
    %c0_14 = arith.constant 0 : index
    %c0_15 = arith.constant 0 : index
    %c0_16 = arith.constant 0 : index
    %19 = vector.load %arg7[%c0_14, %c0_15, %c0_16] : memref<1x16x256xf32, #tpu.memory_space<vmem>>, vector<1x16x256xf32>
    %20 = vector.shape_cast %19 : vector<1x16x256xf32> to vector<16x256xf32>
    %21 = vector.shape_cast %18 : vector<16x256xf32> to vector<1x16x256xf32>
    tpu.vector_store %arg7[%c0_14, %c0_15, %c0_16], %21 {strides = array<i32>} : memref<1x16x256xf32, #tpu.memory_space<vmem>>, vector<1x16x256xf32>,
    return
  }
  func.func @transform_0(%arg0: i32, %arg1: i32) -> (i32, i32, i32) {
    %c0_i32 = arith.constant 0 : i32
    %c0_i32_0 = arith.constant 0 : i32
    return %arg0, %arg1, %c0_i32 : i32, i32, i32
  }
  func.func @transform_1(%arg0: i32, %arg1: i32) -> (i32, i32, i32) {
    %c0_i32 = arith.constant 0 : i32
    %c0_i32_0 = arith.constant 0 : i32
    %c0_i32_1 = arith.constant 0 : i32
    return %arg0, %c0_i32, %c0_i32_0 : i32, i32, i32
  }
  func.func @transform_2(%arg0: i32, %arg1: i32) -> (i32, i32, i32) {
    %c0_i32 = arith.constant 0 : i32
    %c0_i32_0 = arith.constant 0 : i32
    return %arg0, %arg1, %c0_i32 : i32, i32, i32
  }
  func.func @transform_3(%arg0: i32, %arg1: i32) -> (i32, i32, i32) {
    %c0_i32 = arith.constant 0 : i32
    %c0_i32_0 = arith.constant 0 : i32
    %c0_i32_1 = arith.constant 0 : i32
    return %arg0, %c0_i32, %c0_i32_0 : i32, i32, i32
  }
  func.func @transform_4(%arg0: i32, %arg1: i32) -> (i32, i32) {
    %c0_i32 = arith.constant 0 : i32
    %c0_i32_0 = arith.constant 0 : i32
    %c0_i32_1 = arith.constant 0 : i32
    return %c0_i32, %c0_i32_0 : i32, i32
  }
  func.func @transform_5(%arg0: i32, %arg1: i32) -> (i32, i32, i32) {
    %c0_i32 = arith.constant 0 : i32
    %c0_i32_0 = arith.constant 0 : i32
    return %arg0, %arg1, %c0_i32 : i32, i32, i32
  }
}

</mosaic_0001>

<llo_original>
// kernel: tpu_custom_call.1
$region0: #{tpu_custom_call.1}
  #allocation0 [shape = 'u32[]', space=smem, size = 0x4, offset = 0x4, fixed_abs, tag = 'smem constant byte address 0x4 - core index']
  #allocation1 [shape = 'u32[144,128]{1,0:T(1,128)}', space=vmem, size = 0x12000, scoped, tag = 'internal scratch']
  %s0 = inlined_call_operand.vmem [shape: f32[2,16,8], index: 0, kind: input, shape index: {}]
  %s1 = inlined_call_operand.vmem [shape: f32[2,8,256], index: 1, kind: input, shape index: {}]
  %s2 = inlined_call_operand.vmem [shape: f32[2,16,1], index: 2, kind: input, shape index: {}]
  %s3 = inlined_call_operand.vmem [shape: f32[2,1,256], index: 3, kind: input, shape index: {}]
  %s4 = inlined_call_operand.vmem [shape: f32[1,256], index: 4, kind: input, shape index: {}]
  %s5 = inlined_call_operand.hbm [shape: f32[2,16,256], index: 5, kind: output, shape index: {}]
  %s6 = sld [smem:[#allocation0]]
  $region53: #{tpu_custom_call.1} parent=0
    _
  %s8 = ssub.s32 1, %s6
  %s9 = scalar_select 0, %s8, %s6
  $region1: #{tpu_custom_call.1} parent=0
    #allocation2 [shape = 'u8[32768]{0}', space=vmem, size = 0x8000, scoped, tag = 'output window, operand 0']
    #allocation3 [shape = 's32[2]{0}', space=sflag, size = 0x8, scoped, tag = 'scoped memory for tpu_custom_call.1']
    %10 = vsyncpa [#allocation3], 0
    %s11 = scalar_lea.sflag [#allocation3], 1
    %12 = vsyncpa %s11, 0
    loop: start=0, step=1, limit=4
    $region2: #{tpu_custom_call.1} parent=1 // loop_pre_header
      _
    $region3: #{tpu_custom_call.1} parent=1 // loop_header
      %s14 = sphi 0, %s18
      %p15 = scmp.ge.s32.totalorder %s14, 4
      %s21 = sphi 0, %s33
      %s22 = sphi 0, %s29
      %s23 = sphi 0, %s21
      %s24 = sphi 0, %s22
      %s25 = sphi 0, %s23
      %s26 = sphi 0, %s24
      %s38 = sphi 0, %s40
      %s41 = sphi 0, %s38
      %s42 = sphi 0, %s41
      %s58 = sphi 0, %s42
      %s64 = sphi 0, %s66
      %s67 = sphi 0, %s64
      %s68 = sphi 0, %s67
      %s84 = sphi 0, %s68
      %s92 = sphi 0, %s94
      %s95 = sphi 0, %s92
      %s96 = sphi 0, %s95
      %s112 = sphi 0, %s96
      %s118 = sphi 0, %s120
      %s121 = sphi 0, %s118
      %s122 = sphi 0, %s121
      %s138 = sphi 0, %s122
      %s142 = sphi 0, %s142
      %s144 = sphi 0, %s142
      %s145 = sphi 0, %s144
      %s159 = sphi 0, %s145
      %s167 = sphi 0, %s169
      %s170 = sphi 0, %s167
      %s171 = sphi 0, %s170
      %s187 = sphi 0, %s171
    $region4: #{tpu_custom_call.1} parent=1 // loop_header_branch
      %17 = sbr.rel (%p15) target = $region8
    $region5: #{tpu_custom_call.1} parent=1 // loop_body
      %s19 = ssub.s32 %s14, 1
      %s20 = ssub.s32 %s14, 2
      %s27 = sadd.s32 1, %s22
      %p28 = scmp.ge.s32.totalorder %s27, 1
      %s29 = scalar_select %p28, 0, %s27
      %s30 = sadd.s32 1, %s21
      %s31 = scalar_select %p28, %s30, %s21
      %p32 = scmp.ge.s32.totalorder %s31, 2
      %s33 = scalar_select %p32, 0, %s31
      %s34 = ssub.s32 %s21, %s33
      %s35 = ssub.s32 %s22, %s29
      %s36 = sor.u32 %s34, %s35
      %p37 = scmp.eq.s32.totalorder %s36, 0
      %s39 = sadd.s32 %s38, 1
      %s40 = scalar_select %p37, %s38, %s39
      %p43 = pneg %p37
      %p44 = scmp.eq.s32.totalorder %s14, 1
      %p45 = por %p43, %p44
      %p46 = scmp.ne.s32.totalorder %s38, %s41
      %p47 = scmp.eq.s32.totalorder %s14, 0
      %p48 = por %p46, %p47
      %p49 = scmp.ne.s32.totalorder %s38, %s41
      %p50 = scmp.eq.s32.totalorder %s19, 1
      %p51 = por %p49, %p50
      %p52 = scmp.ne.s32.totalorder %s41, %s42
      %p53 = scmp.eq.s32.totalorder %s19, 0
      %p54 = por %p52, %p53
      %p55 = scmp.ne.s32.totalorder %s41, %s42
      %p56 = scmp.eq.s32.totalorder %s20, 1
      %p57 = por %p55, %p56
      %p59 = scmp.ne.s32.totalorder %s42, %s58
      %p60 = scmp.eq.s32.totalorder %s20, 0
      %p61 = por %p59, %p60
      %s62 = ssub.s32 %s21, %s33
      %p63 = scmp.eq.s32.totalorder %s62, 0
      %s65 = sadd.s32 %s64, 1
      %s66 = scalar_select %p63, %s64, %s65
      %p69 = pneg %p63
      %p70 = scmp.eq.s32.totalorder %s14, 1
      %p71 = por %p69, %p70
      %p72 = scmp.ne.s32.totalorder %s64, %s67
      %p73 = scmp.eq.s32.totalorder %s14, 0
      %p74 = por %p72, %p73
      %p75 = scmp.ne.s32.totalorder %s64, %s67
      %p76 = scmp.eq.s32.totalorder %s19, 1
      %p77 = por %p75, %p76
      %p78 = scmp.ne.s32.totalorder %s67, %s68
      %p79 = scmp.eq.s32.totalorder %s19, 0
      %p80 = por %p78, %p79
      %p81 = scmp.ne.s32.totalorder %s67, %s68
      %p82 = scmp.eq.s32.totalorder %s20, 1
      %p83 = por %p81, %p82
      %p85 = scmp.ne.s32.totalorder %s68, %s84
      %p86 = scmp.eq.s32.totalorder %s20, 0
      %p87 = por %p85, %p86
      %s88 = ssub.s32 %s21, %s33
      %s89 = ssub.s32 %s22, %s29
      %s90 = sor.u32 %s88, %s89
      %p91 = scmp.eq.s32.totalorder %s90, 0
      %s93 = sadd.s32 %s92, 1
      %s94 = scalar_select %p91, %s92, %s93
      %p97 = pneg %p91
      %p98 = scmp.eq.s32.totalorder %s14, 1
      %p99 = por %p97, %p98
      %p100 = scmp.ne.s32.totalorder %s92, %s95
      %p101 = scmp.eq.s32.totalorder %s14, 0
      %p102 = por %p100, %p101
      %p103 = scmp.ne.s32.totalorder %s92, %s95
      %p104 = scmp.eq.s32.totalorder %s19, 1
      %p105 = por %p103, %p104
      %p106 = scmp.ne.s32.totalorder %s95, %s96
      %p107 = scmp.eq.s32.totalorder %s19, 0
      %p108 = por %p106, %p107
      %p109 = scmp.ne.s32.totalorder %s95, %s96
      %p110 = scmp.eq.s32.totalorder %s20, 1
      %p111 = por %p109, %p110
      %p113 = scmp.ne.s32.totalorder %s96, %s112
      %p114 = scmp.eq.s32.totalorder %s20, 0
      %p115 = por %p113, %p114
      %s116 = ssub.s32 %s21, %s33
      %p117 = scmp.eq.s32.totalorder %s116, 0
      %s119 = sadd.s32 %s118, 1
      %s120 = scalar_select %p117, %s118, %s119
      %p123 = pneg %p117
      %p124 = scmp.eq.s32.totalorder %s14, 1
      %p125 = por %p123, %p124
      %p126 = scmp.ne.s32.totalorder %s118, %s121
      %p127 = scmp.eq.s32.totalorder %s14, 0
      %p128 = por %p126, %p127
      %p129 = scmp.ne.s32.totalorder %s118, %s121
      %p130 = scmp.eq.s32.totalorder %s19, 1
      %p131 = por %p129, %p130
      %p132 = scmp.ne.s32.totalorder %s121, %s122
      %p133 = scmp.eq.s32.totalorder %s19, 0
      %p134 = por %p132, %p133
      %p135 = scmp.ne.s32.totalorder %s121, %s122
      %p136 = scmp.eq.s32.totalorder %s20, 1
      %p137 = por %p135, %p136
      %p139 = scmp.ne.s32.totalorder %s122, %s138
      %p140 = scmp.eq.s32.totalorder %s20, 0
      %p141 = por %p139, %p140
      %s143 = sadd.s32 %s142, 1
      %p146 = scmp.eq.s32.totalorder %s14, 1
      %p147 = scmp.ne.s32.totalorder %s142, %s144
      %p148 = scmp.eq.s32.totalorder %s14, 0
      %p149 = por %p147, %p148
      %p150 = scmp.ne.s32.totalorder %s142, %s144
      %p151 = scmp.eq.s32.totalorder %s19, 1
      %p152 = por %p150, %p151
      %p153 = scmp.ne.s32.totalorder %s144, %s145
      %p154 = scmp.eq.s32.totalorder %s19, 0
      %p155 = por %p153, %p154
      %p156 = scmp.ne.s32.totalorder %s144, %s145
      %p157 = scmp.eq.s32.totalorder %s20, 1
      %p158 = por %p156, %p157
      %p160 = scmp.ne.s32.totalorder %s145, %s159
      %p161 = scmp.eq.s32.totalorder %s20, 0
      %p162 = por %p160, %p161
      %s163 = ssub.s32 %s21, %s33
      %s164 = ssub.s32 %s22, %s29
      %s165 = sor.u32 %s163, %s164
      %p166 = scmp.eq.s32.totalorder %s165, 0
      %s168 = sadd.s32 %s167, 1
      %s169 = scalar_select %p166, %s167, %s168
      %p172 = pneg %p166
      %p173 = scmp.eq.s32.totalorder %s14, 1
      %p174 = por %p172, %p173
      %p175 = scmp.ne.s32.totalorder %s167, %s170
      %p176 = scmp.eq.s32.totalorder %s14, 0
      %p177 = por %p175, %p176
      %p178 = scmp.ne.s32.totalorder %s167, %s170
      %p179 = scmp.eq.s32.totalorder %s19, 1
      %p180 = por %p178, %p179
      %p181 = scmp.ne.s32.totalorder %s170, %s171
      %p182 = scmp.eq.s32.totalorder %s19, 0
      %p183 = por %p181, %p182
      %p184 = scmp.ne.s32.totalorder %s170, %s171
      %p185 = scmp.eq.s32.totalorder %s20, 1
      %p186 = por %p184, %p185
      %p188 = scmp.ne.s32.totalorder %s171, %s187
      %p189 = scmp.eq.s32.totalorder %s20, 0
      %p190 = por %p188, %p189
      %p191 = scmp.le.s32.totalorder 1, %s14
      %p192 = scmp.lt.s32.totalorder %s14, 3
      %p193 = pnand %p191, %p192
      %p194 = pneg %p193
      // Predicated region
      $region9: #{tpu_custom_call.1} parent=5 // pred_check
        _
      $region10: #{tpu_custom_call.1} parent=5 // pred_check_branch
        %196 = sbr.rel (%p193) target = $region12
      $region11: #{tpu_custom_call.1} parent=5 // pred_region
        %s197 = ssub.s32 %s14, 1
        // Predicated region
        $region13: #{tpu_custom_call.1} parent=11 // pred_check
          %p198 = pneg %p155
        $region14: #{tpu_custom_call.1} parent=11 // pred_check_branch
          %200 = sbr.rel (%p198) target = $region16
        $region15: #{tpu_custom_call.1} parent=11 // pred_region
          _
        $region16: #{tpu_custom_call.1} parent=11 // pred_fallthru
          _
      $region12: #{tpu_custom_call.1} parent=5 // pred_fallthru
        _
      %p201 = scmp.lt.s32.totalorder %s14, 2
      // Predicated region
      $region17: #{tpu_custom_call.1} parent=5 // pred_check
        %p202 = pneg %p201
      $region18: #{tpu_custom_call.1} parent=5 // pred_check_branch
        %204 = sbr.rel (%p202) target = $region20
      $region19: #{tpu_custom_call.1} parent=5 // pred_region
        // Predicated region
        $region21: #{tpu_custom_call.1} parent=19 // pred_check
          %p205 = pneg %p48
        $region22: #{tpu_custom_call.1} parent=19 // pred_check_branch
          %207 = sbr.rel (%p205) target = $region24
        $region23: #{tpu_custom_call.1} parent=19 // pred_region
          %s208 = smul.u32 2, %s22
          %p209 = scmp.lt.s32.totalorder %s21, 1
          %s210 = scalar_select %p209, %s21, 1
          %p211 = scmp.lt.s32.totalorder %s208, 1
          %s212 = scalar_select %p211, %s208, 1
          %s213 = smul.addr %s210, 2
          %s214 = sadd.s32 %s212, %s213
          %s215 = smul.addr %s214, 8
          %s216 = scalar_lea.vmem %s0, %s215
          %s217 = smul.u32 2, %s22
        $region24: #{tpu_custom_call.1} parent=19 // pred_fallthru
          _
        // Predicated region
        $region25: #{tpu_custom_call.1} parent=19 // pred_check
          %p218 = pneg %p74
        $region26: #{tpu_custom_call.1} parent=19 // pred_check_branch
          %220 = sbr.rel (%p218) target = $region28
        $region27: #{tpu_custom_call.1} parent=19 // pred_region
          %p221 = scmp.lt.s32.totalorder %s21, 1
          %s222 = scalar_select %p221, %s21, 1
          %s223 = smul.addr %s222, 2
          %s224 = smul.addr %s223, 8
          %s225 = scalar_lea.vmem %s1, %s224
        $region28: #{tpu_custom_call.1} parent=19 // pred_fallthru
          _
        // Predicated region
        $region29: #{tpu_custom_call.1} parent=19 // pred_check
          %p226 = pneg %p102
        $region30: #{tpu_custom_call.1} parent=19 // pred_check_branch
          %228 = sbr.rel (%p226) target = $region32
        $region31: #{tpu_custom_call.1} parent=19 // pred_region
          %s229 = smul.u32 2, %s22
          %p230 = scmp.lt.s32.totalorder %s21, 1
          %s231 = scalar_select %p230, %s21, 1
          %p232 = scmp.lt.s32.totalorder %s229, 1
          %s233 = scalar_select %p232, %s229, 1
          %s234 = smul.addr %s231, 2
          %s235 = sadd.s32 %s233, %s234
          %s236 = smul.addr %s235, 8
          %s237 = scalar_lea.vmem %s2, %s236
          %s238 = smul.u32 2, %s22
        $region32: #{tpu_custom_call.1} parent=19 // pred_fallthru
          _
        // Predicated region
        $region33: #{tpu_custom_call.1} parent=19 // pred_check
          %p239 = pneg %p128
        $region34: #{tpu_custom_call.1} parent=19 // pred_check_branch
          %241 = sbr.rel (%p239) target = $region36
        $region35: #{tpu_custom_call.1} parent=19 // pred_region
          %p242 = scmp.lt.s32.totalorder %s21, 1
          %s243 = scalar_select %p242, %s21, 1
          %s244 = smul.addr %s243, 2
          %s245 = scalar_lea.vmem %s3, %s244
        $region36: #{tpu_custom_call.1} parent=19 // pred_fallthru
          _
      $region20: #{tpu_custom_call.1} parent=5 // pred_fallthru
        _
      %p246 = scmp.le.s32.totalorder 1, %s14
      %p247 = scmp.lt.s32.totalorder %s14, 3
      %p248 = pnand %p246, %p247
      %p249 = pneg %p248
      // Predicated region
      $region37: #{tpu_custom_call.1} parent=5 // pred_check
        _
      $region38: #{tpu_custom_call.1} parent=5 // pred_check_branch
        %251 = sbr.rel (%p248) target = $region40
      $region39: #{tpu_custom_call.1} parent=5 // pred_region
        %s252 = ssub.s32 %s14, 1
        %s253 = smul.u32 2, %s24
        %p254 = scmp.lt.s32.totalorder %s23, 1
        %s255 = scalar_select %p254, %s23, 1
        %p256 = scmp.lt.s32.totalorder %s253, 1
        %s257 = scalar_select %p256, %s253, 1
        %s258 = smul.addr %s255, 2
        %s259 = sadd.s32 %s257, %s258
        %s260 = smul.addr %s259, 8
        %s261 = scalar_lea.vmem %s0, %s260
        %p262 = pneg %p54
        %p263 = pneg %p51
        %p264 = scmp.lt.s32.totalorder %s23, 1
        %s265 = scalar_select %p264, %s23, 1
        %s266 = smul.addr %s265, 2
        %s267 = smul.addr %s266, 8
        %s268 = scalar_lea.vmem %s1, %s267
        %p269 = pneg %p80
        %p270 = pneg %p77
        %s271 = smul.u32 2, %s24
        %p272 = scmp.lt.s32.totalorder %s23, 1
        %s273 = scalar_select %p272, %s23, 1
        %p274 = scmp.lt.s32.totalorder %s271, 1
        %s275 = scalar_select %p274, %s271, 1
        %s276 = smul.addr %s273, 2
        %s277 = sadd.s32 %s275, %s276
        %s278 = smul.addr %s277, 8
        %s279 = scalar_lea.vmem %s2, %s278
        %p280 = pneg %p108
        %p281 = pneg %p105
        %p282 = scmp.lt.s32.totalorder %s23, 1
        %s283 = scalar_select %p282, %s23, 1
        %s284 = smul.addr %s283, 2
        %s285 = scalar_lea.vmem %s3, %s284
        %p286 = pneg %p134
        %p287 = pneg %p131
        %p288 = pneg %p155
        %p289 = pneg %p152
        %p290 = pneg %p183
        %p291 = pneg %p180
        %s292 = sand.u32 %s170, 1
        %s293 = scalar_lea.sflag [#allocation3], %s292
        %s294 = sand.u32 %s170, 1
        %s295 = smul.addr %s294, 32
        %s296 = scalar_lea.vmem [#allocation2], %s295
        %s297 = smul.u32 2, %s24
        %p298 = scmp.lt.s32.totalorder %s23, 1
        %s299 = scalar_select %p298, %s23, 1
        %p300 = scmp.lt.s32.totalorder %s297, 1
        %s301 = scalar_select %p300, %s297, 1
        %s302 = smul.addr %s299, 2
        %s303 = sadd.s32 %s301, %s302
        %s304 = smul.addr %s303, 8
        %s305 = scalar_lea.vmem %s0, %s304
        %s306 = smul.u32 2, %s24
        %p307 = scmp.lt.s32.totalorder %s23, 1
        %s308 = scalar_select %p307, %s23, 1
        %s309 = smul.addr %s308, 2
        %s310 = smul.addr %s309, 8
        %s311 = scalar_lea.vmem %s1, %s310
        %s312 = smul.u32 2, %s24
        %p313 = scmp.lt.s32.totalorder %s23, 1
        %s314 = scalar_select %p313, %s23, 1
        %p315 = scmp.lt.s32.totalorder %s312, 1
        %s316 = scalar_select %p315, %s312, 1
        %s317 = smul.addr %s314, 2
        %s318 = sadd.s32 %s316, %s317
        %s319 = smul.addr %s318, 8
        %s320 = scalar_lea.vmem %s2, %s319
        %s321 = smul.u32 2, %s24
        %p322 = scmp.lt.s32.totalorder %s23, 1
        %s323 = scalar_select %p322, %s23, 1
        %s324 = smul.addr %s323, 2
        %s325 = scalar_lea.vmem %s3, %s324
        %s326 = smul.u32 2, %s24
        %v327 = vld [vmem:[%s305] sm:$0xff]
        %v328 = vld [vmem:[%s305 + $0x8] sm:$0xff]
        %v329 = vld [vmem:[%s311] sm:$0xff]
        %v330 = vld [vmem:[%s311 + $0x8] sm:$0xff]
        %v331 = vld [vmem:[%s4] sm:$0x3]
        %v333 = vlaneseq
        %v334 = vshrl.u32 %v333, 7
        %v335 = vsub.s32 0, %v334
        %v336 = vrot.slane %v331, %v335
        %v337 = vlaneseq
        %v338 = vshrl.u32 %v337, 7
        %v339 = vsub.s32 1, %v338
        %v340 = vrot.slane %v331, %v339
        %vm343 = vcmask 64512
        %v345 = vsel %vm343, %v327, 0
        %v348 = vsel %vm343, %v328, 0
        %350 = vmatprep.subr.mxu0 %v330
        %351 = vmatpush1.msra.mxu0 %v329
        %352 = vmatprep.subr.mxu0 0.0
        %353 = vmatpush1.msra.mxu0 0.0
        %354 = vmatprep.subr.mxu0 0.0
        %355 = vmatpush1.msra.mxu0 0.0
        %356 = vmatprep.subr.mxu0 0.0
        %357 = vmatpush1.msra.mxu0 0.0
        %358 = vmatprep.subr.mxu0 0.0
        %359 = vmatpush1.msra.mxu0 0.0
        %360 = vmatprep.subr.mxu0 0.0
        %361 = vmatpush1.msra.mxu0 0.0
        %362 = vmatprep.subr.mxu0 0.0
        %363 = vmatpush1.msra.mxu0 0.0
        %364 = vmatprep.subr.mxu0 0.0
        %365 = vmatpush1.msra.mxu0 0.0
        %366 = vmatprep.subr.mxu0 0.0
        %367 = vmatpush1.msra.mxu0 0.0
        %368 = vmatprep.subr.mxu0 0.0
        %369 = vmatpush1.msra.mxu0 0.0
        %370 = vmatprep.subr.mxu0 0.0
        %371 = vmatpush1.msra.mxu0 0.0
        %372 = vmatprep.subr.mxu0 0.0
        %373 = vmatpush1.msra.mxu0 0.0
        %374 = vmatprep.subr.mxu0 0.0
        %375 = vmatpush1.msra.mxu0 0.0
        %376 = vmatprep.subr.mxu0 0.0
        %377 = vmatpush1.msra.mxu0 0.0
        %378 = vmatprep.subr.mxu0 0.0
        %379 = vmatpush1.msra.mxu0 0.0
        %380 = vmatprep.subr.mxu0 0.0
        %381 = vmatpush1.msra.mxu0 0.0
        %382 = vmatprep.subr.mxu0 0.0
        %383 = vmatpush1.msra.mxu0 0.0
        %384 = vmatprep.subr.mxu0 0.0
        %385 = vmatpush1.msra.mxu0 0.0
        %386 = vmatprep.subr.mxu0 0.0
        %387 = vmatpush1.msra.mxu0 0.0
        %388 = vmatprep.subr.mxu0 0.0
        %389 = vmatpush1.msra.mxu0 0.0
        %390 = vmatprep.subr.mxu0 0.0
        %391 = vmatpush1.msra.mxu0 0.0
        %392 = vmatprep.subr.mxu0 0.0
        %393 = vmatpush1.msra.mxu0 0.0
        %394 = vmatprep.subr.mxu0 0.0
        %395 = vmatpush1.msra.mxu0 0.0
        %396 = vmatprep.subr.mxu0 0.0
        %397 = vmatpush1.msra.mxu0 0.0
        %398 = vmatprep.subr.mxu0 0.0
        %399 = vmatpush1.msra.mxu0 0.0
        %400 = vmatprep.subr.mxu0 0.0
        %401 = vmatpush1.msra.mxu0 0.0
        %402 = vmatprep.subr.mxu0 0.0
        %403 = vmatpush1.msra.mxu0 0.0
        %404 = vmatprep.subr.mxu0 0.0
        %405 = vmatpush1.msra.mxu0 0.0
        %406 = vmatprep.subr.mxu0 0.0
        %407 = vmatpush1.msra.mxu0 0.0
        %408 = vmatprep.subr.mxu0 0.0
        %409 = vmatpush1.msra.mxu0 0.0
        %410 = vmatprep.subr.mxu0 0.0
        %411 = vmatpush1.msra.mxu0 0.0
        %412 = vmatprep.subr.mxu0 0.0
        %413 = vmatpush1.msra.mxu0 0.0
        %414 = vmatprep.mubr.f32.mxu0 0.0
        %415 = vmatmul.mubr.f32.gmra.mrb[0].mxu0 %v345
        %v416 = vpop.f32.mrb[0].mxu0
        %v417 = vadd.f32 %v336, %v416
        %v418 = vpop.f32.mrb[0].mxu0
        %v419 = vadd.f32 %v340, %v418
        %420 = vmatprep.mubr.f32.mxu0 0.0
        %421 = vmatmul.mubr.f32.gmra.mrb[0].mxu0 %v348
        %v422 = vpop.f32.mrb[0].mxu0
        %v423 = vadd.f32 %v336, %v422
        %v424 = vpop.f32.mrb[0].mxu0
        %v425 = vadd.f32 %v340, %v424
        %426 = vdwg.mxu0
        %v427 = vld [vmem:[%s320] sm:$0xff]
        %v428 = vld [vmem:[%s320 + $0x8] sm:$0xff]
        %v429 = vld [vmem:[%s325] sm:$0x3]
        %431 = vset.pattern.permute.xlu0 0
        %432 = vperm.xlu0 %431, %v427
        %v433 = vpop.permute.xlu0 %432
        %436 = vset.pattern.permute.xlu0 0
        %437 = vperm.xlu0 %436, %v428
        %v438 = vpop.permute.xlu0 %437
        %v441 = vlaneseq
        %v442 = vshrl.u32 %v441, 7
        %v443 = vsub.s32 0, %v442
        %v444 = vrot.slane %v429, %v443
        %v445 = vlaneseq
        %v446 = vshrl.u32 %v445, 7
        %v447 = vsub.s32 1, %v446
        %v448 = vrot.slane %v429, %v447
        %v451 = vmul.f32 %v433, %v444
        %v452 = vmul.f32 %v433, %v448
        %v453 = vmul.f32 %v438, %v444
        %v454 = vmul.f32 %v438, %v448
        %v455 = vadd.f32 %v451, 0.001
        %v456 = vadd.f32 %v452, 0.001
        %v457 = vadd.f32 %v453, 0.001
        %v458 = vadd.f32 %v454, 0.001
        %v459 = vrcp.pop %v455
        %v460 = vrcp.pop %v456
        %v461 = vrcp.pop %v457
        %v462 = vrcp.pop %v458
        %v463 = vmul.f32 %v417, %v459
        %v464 = vmul.f32 %v419, %v460
        %v465 = vmul.f32 %v423, %v461
        %v466 = vmul.f32 %v425, %v462
        %467 = vst [vmem:[%s296] sm:$0xff] %v463
        %468 = vst [vmem:[%s296 + $0x8] sm:$0xff] %v464
        %469 = vst [vmem:[%s296 + $0x10] sm:$0xff] %v465
        %470 = vst [vmem:[%s296 + $0x18] sm:$0xff] %v466
        %s471 = sand.u32 %s170, 1
        %s472 = scalar_lea.sflag [#allocation3], %s471
        %s473 = sand.u32 %s170, 1
        %s474 = smul.addr %s473, 32
        %s475 = scalar_lea.vmem [#allocation2], %s474
        // Predicated region
        $region41: #{tpu_custom_call.1} parent=39 // pred_check
          %p476 = pneg %p180
        $region42: #{tpu_custom_call.1} parent=39 // pred_check_branch
          %478 = sbr.rel (%p476) target = $region44
        $region43: #{tpu_custom_call.1} parent=39 // pred_region
          %s479 = smul.u32 2, %s24
          %s481 = ssub.s32 512, 512
          %482 = vsyncadd %s472, %s481
          %s483 = smul.addr %s479, 2
          %s484 = smul.addr %s23, 4
          %s485 = sadd.s32 %s483, %s484
          %s486 = smul.addr %s485, 128
          %s487 = scalar_lea.hbm %s5, %s486
          %s488 = sshll.u32 %s475, 4
          %s489 = int_to_ptr.vmem [resolvable:$true] %s488
          %494 = dma.vmem_to_hbm [thread:$0]  %s489, 512, %s487, %s472, 256, 256, 16
        $region44: #{tpu_custom_call.1} parent=39 // pred_fallthru
          _
      $region40: #{tpu_custom_call.1} parent=5 // pred_fallthru
        _
      %p495 = scmp.le.s32.totalorder 2, %s14
      // Predicated region
      $region45: #{tpu_custom_call.1} parent=5 // pred_check
        %p496 = pneg %p495
      $region46: #{tpu_custom_call.1} parent=5 // pred_check_branch
        %498 = sbr.rel (%p496) target = $region48
      $region47: #{tpu_custom_call.1} parent=5 // pred_region
        %s499 = ssub.s32 %s14, 2
        // Predicated region
        $region49: #{tpu_custom_call.1} parent=47 // pred_check
          %p500 = pneg %p186
        $region50: #{tpu_custom_call.1} parent=47 // pred_check_branch
          %502 = sbr.rel (%p500) target = $region52
        $region51: #{tpu_custom_call.1} parent=47 // pred_region
          %s503 = sand.u32 %s171, 1
          %s504 = scalar_lea.sflag [#allocation3], %s503
          %s505 = sand.u32 %s171, 1
          %s506 = smul.addr %s505, 32
          %s507 = scalar_lea.vmem [#allocation2], %s506
          %508 = dma.done %s504, 512
        $region52: #{tpu_custom_call.1} parent=47 // pred_fallthru
          _
      $region48: #{tpu_custom_call.1} parent=5 // pred_fallthru
        _
    $region6: #{tpu_custom_call.1} parent=1 // loop_footer
      %s18 = sadd.s32 1, %s14
    $region7: #{tpu_custom_call.1} parent=1 // loop_footer_branch
      %13 = sbr.rel target = $region3
    $region8: #{tpu_custom_call.1} parent=1 // loop_exit
      _
    %509 = vsyncpa [#allocation3], 1
    %s510 = scalar_lea.sflag [#allocation3], 1
    %511 = vsyncpa %s510, 1

</llo_original>
